<compile_context>
chip_gen: v6e
topology: v6e:2x2x1
jax: 0.10.0
libtpu: 0.0.40
codegen_flags: <defaults>
</compile_context>

<pallas_src>
import jax
import jax.numpy as jnp
from jax.experimental import pallas as pl
from jax.experimental.pallas import tpu as pltpu

_LANE = 128
_MXU_MIN_C = 8          # run the channel contraction on the MXU once C >= 8


def _round_up(x, m):
    return ((x + m - 1) // m) * m


def _vmem_capacity_bytes():
    """Physical VMEM of the current chip; conservative default if unknown."""
    try:
        info = pltpu.get_tpu_info()
        cap = getattr(info, "vmem_capacity_bytes", None)
        if cap:
            return int(cap)
    except Exception:
        pass
    return 64 * 1024 * 1024          # assume the smallest (v7x-sized) VMEM


def _budgets(vmem_capacity):
    if vmem_capacity >= 96 * 1024 * 1024:          # v5e / v6e: 128 MiB physical
        return dict(vmem_limit=64 * 1024 * 1024,
                    target_tile_bytes=8 * 1024 * 1024,
                    single_pass_budget=24 * 1024 * 1024)
    # v7x: 64 MiB physical per TensorCore -> tighter accounting + headroom
    return dict(vmem_limit=48 * 1024 * 1024,
                target_tile_bytes=3 * 1024 * 1024,
                single_pass_budget=12 * 1024 * 1024)


def _pick_hw_tile(C, HW, itemsize, target_tile_bytes):
    """Largest lane-aligned H*W tile within ~target_tile_bytes (sublane-padding
    aware), preferring a tile that divides HW exactly (no masked tail stores)."""
    sub = max(1, 32 // itemsize)                    # f32 -> 8, bf16 -> 16, i8 -> 32
    bytes_per_lane_col = _round_up(C, sub) * itemsize
    max_lanes = max(_LANE, target_tile_bytes // bytes_per_lane_col)
    max_lanes = (max_lanes // _LANE) * _LANE
    if HW <= max_lanes:
        return HW                                   # block == full dim (always legal)
    for t in range(max_lanes, 0, -_LANE):           # divisible multiple of 128
        if HW % t == 0:
            return t
    return max_lanes                                 # ragged tail; safe (per-lane op)


def _kjian_gate(x, wkj_f32):
    """Per-pixel sigmoid(1x1-conv) gate. x: (C, hw) native dtype, wkj: (C,1) f32."""
    C = x.shape[0]
    if C >= _MXU_MIN_C:
        # MXU: contract over channels, accumulate in f32 (no full-tile upcast).
        s = jax.lax.dot_general(
            wkj_f32.astype(x.dtype), x,
            dimension_numbers=(((0,), (0,)), ((), ())),
            preferred_element_type=jnp.float32)      # (1, hw) f32
    else:
        # VPU: keep the multiply in the input dtype, widen only the reduction.
        s = jnp.sum((x * wkj_f32.astype(x.dtype)).astype(jnp.float32),
                    axis=0, keepdims=True)           # (1, hw) f32
    return jax.nn.sigmoid(s)


def _hb_single_pass_kernel(x_ref, wkj_ref, wtd_ref, o_ref):
    """grid=(N,): whole image resident in VMEM -> both gates in one HBM pass."""
    x = x_ref[0]                                     # (C, HW) native dtype
    HW = x.shape[1]

    kj_gate = _kjian_gate(x, wkj_ref[...])           # (1, HW) f32

    # tdao gate: relu(w_td . mean_{hw} x) -> one scalar for the whole image.
    ch_mean = jnp.sum(x, axis=1, keepdims=True,
                      dtype=jnp.float32) * (1.0 / HW)          # (C, 1) f32
    td_gate = jax.nn.relu(jnp.sum(ch_mean * wtd_ref[...]))      # () f32

    u_kj = x * kj_gate.astype(x.dtype)
    u_td = x * td_gate.astype(x.dtype)
    o_ref[0] = jnp.maximum(u_td, u_kj).astype(o_ref.dtype)


def _make_hb_tiled_kernel(num_hw_tiles):
    """Two-pass fallback: tdao gates precomputed (SMEM), flat 1-D grid."""
    def kernel(x_ref, wkj_ref, g_ref, o_ref):
        n = pl.program_id(0) // num_hw_tiles         # batch index of this step
        x = x_ref[0]                                  # (C, hw_tile) native dtype
        kj_gate = _kjian_gate(x, wkj_ref[...])        # (1, hw_tile) f32
        td_gate = g_ref[n]                            # per-image scalar (SMEM, f32)
        u_kj = x * kj_gate.astype(x.dtype)
        u_td = x * td_gate.astype(x.dtype)
        o_ref[0] = jnp.maximum(u_td, u_kj).astype(o_ref.dtype)
    return kernel


def hb_forward(x_nchw, w_kjian, w_tdao):
    """x_nchw: (N, C, H, W); w_kjian / w_tdao: (1, C, 1, 1) conv weights."""
    N, C, H, W = x_nchw.shape
    HW = H * W
    itemsize = x_nchw.dtype.itemsize

    x_flat = x_nchw.reshape(N, C, HW)                # metadata-only reshape
    w_kj_col = w_kjian.reshape(C, 1).astype(jnp.float32)   # casts hoisted here
    w_td_col = w_tdao.reshape(C, 1).astype(jnp.float32)

    budgets = _budgets(_vmem_capacity_bytes())

    # Does one (sublane/lane padded) image fit in VMEM with double-buffered
    # in+out blocks (plus an f32 reduce temp for sub-32-bit dtypes)?
    sub = max(1, 32 // itemsize)
    padded_img = _round_up(C, sub) * _round_up(HW, _LANE) * itemsize
    f32_temp = _round_up(C, 8) * _round_up(HW, _LANE) * 4 if itemsize < 4 else 0
    single_pass = (4 * padded_img + f32_temp) <= budgets["single_pass_budget"]

    if single_pass:
        # One HBM pass over x: both gates computed in-kernel.
        out_flat = pl.pallas_call(
            _hb_single_pass_kernel,
            out_shape=jax.ShapeDtypeStruct((N, C, HW), x_nchw.dtype),
            grid_spec=pltpu.PrefetchScalarGridSpec(
                num_scalar_prefetch=0,
                grid=(N,),
                in_specs=[
                    pl.BlockSpec((1, C, HW), lambda n: (n, 0, 0)),
                    pl.BlockSpec((C, 1), lambda n: (0, 0)),
                    pl.BlockSpec((C, 1), lambda n: (0, 0)),
                ],
                out_specs=pl.BlockSpec((1, C, HW), lambda n: (n, 0, 0)),
            ),
            compiler_params=pltpu.CompilerParams(
                dimension_semantics=("parallel",),
                vmem_limit_bytes=budgets["vmem_limit"],
            ),
        )(x_flat, w_kj_col, w_td_col)
    else:
        # Image too big for VMEM: precompute the per-image tdao gate with a
        # single fused XLA reduction (tiny output), then stream x once more
        # through the tiled Pallas pass for the per-pixel work.
        g_td = jax.nn.relu(
            jnp.mean(x_flat, axis=-1, dtype=jnp.float32)
            @ w_td_col.reshape(C))                                    # (N,) f32

        hw_tile = _pick_hw_tile(C, HW, itemsize, budgets["target_tile_bytes"])
        num_tiles = pl.cdiv(HW, hw_tile)
        # Flat 1-D parallel grid: balances across v7x's 2 TCs even for tiny N.
        grid = (N * num_tiles,)
        x_map = lambda i: (i // num_tiles, 0, i % num_tiles)

        out_flat = pl.pallas_call(
            _make_hb_tiled_kernel(num_tiles),
            out_shape=jax.ShapeDtypeStruct((N, C, HW), x_nchw.dtype),
            grid_spec=pltpu.PrefetchScalarGridSpec(
                num_scalar_prefetch=0,
                grid=grid,
                in_specs=[
                    pl.BlockSpec((1, C, hw_tile), x_map),
                    pl.BlockSpec((C, 1), lambda i: (0, 0)),
                    pl.BlockSpec(memory_space=pltpu.MemorySpace.SMEM),
                ],
                out_specs=pl.BlockSpec((1, C, hw_tile), x_map),
            ),
            compiler_params=pltpu.CompilerParams(
                dimension_semantics=("parallel",),
                vmem_limit_bytes=budgets["vmem_limit"],
            ),
        )(x_flat, w_kj_col, g_td)
        # TODO(synk): if round_up(C, sub)*128*itemsize ever exceeds the tile
        # budget (extremely large C), a C-tiled accumulation pass is needed.

    return out_flat.reshape(N, C, H, W)


if __name__ == "__main__":
    key = jax.random.PRNGKey(0)
    kx, kw1, kw2 = jax.random.split(key, 3)

    N, C, H, W = 2, 4, 16, 16
    x = jax.random.normal(kx, (N, C, H, W), dtype=jnp.float32)
    w_kj = jax.random.normal(kw1, (1, C, 1, 1), dtype=jnp.float32) * 0.1
    w_td = jax.random.normal(kw2, (1, C, 1, 1), dtype=jnp.float32) * 0.1

    out = jax.block_until_ready(hb_forward(x, w_kj, w_td))

    # Pure-JAX reference of hb.forward = max(tdao(U), kjian(U)).
    kj_gate = jax.nn.sigmoid(
        jnp.einsum("nchw,c->nhw", x, w_kj.reshape(C)))[:, None, :, :]
    u_kj = x * kj_gate
    td_gate = jax.nn.relu(jnp.mean(x, axis=(2, 3)) @ w_td.reshape(C))   # (N,)
    u_td = x * td_gate[:, None, None, None]
    ref = jnp.maximum(u_td, u_kj)

    assert out.shape == x.shape
    err = float(jnp.max(jnp.abs(out - ref)))
    assert jnp.allclose(out, ref, atol=1e-5, rtol=1e-5), err
    print("KERNEL_OK")
</pallas_src>

<mosaic_0001>
module attributes {stable_mosaic.version = 11 : i64} {
  func.func @_hb_single_pass_kernel(%arg0: i32, %arg1: memref<1x4x256xf32, #tpu.memory_space<vmem>>, %arg2: memref<4x1xf32, #tpu.memory_space<vmem>>, %arg3: memref<4x1xf32, #tpu.memory_space<vmem>>, %arg4: memref<1x4x256xf32, #tpu.memory_space<vmem>>) attributes {dimension_semantics = [#tpu.dimension_semantics<parallel>], iteration_bounds = array<i64: 2>, scalar_prefetch = 0 : i64, scratch_operands = 0 : i64, tpu.core_type = #tpu.core_type<tc>, window_params = [{transform_indices = @transform_0, window_bounds = array<i64: 1, 4, 256>}, {pipeline_mode = #tpu.pipeline_mode<synchronous>, transform_indices = @transform_1, window_bounds = array<i64: 4, 1>}, {pipeline_mode = #tpu.pipeline_mode<synchronous>, transform_indices = @transform_2, window_bounds = array<i64: 4, 1>}, {transform_indices = @transform_3, window_bounds = array<i64: 1, 4, 256>}]} {
    %c0 = arith.constant 0 : index
    %c0_0 = arith.constant 0 : index
    %c0_1 = arith.constant 0 : index
    %0 = vector.load %arg1[%c0, %c0_0, %c0_1] : memref<1x4x256xf32, #tpu.memory_space<vmem>>, vector<1x4x256xf32>
    %1 = vector.shape_cast %0 : vector<1x4x256xf32> to vector<4x256xf32>
    %c0_2 = arith.constant 0 : index
    %c0_3 = arith.constant 0 : index
    %2 = vector.load %arg2[%c0_2, %c0_3] : memref<4x1xf32, #tpu.memory_space<vmem>>, vector<4x1xf32>
    %3 = vector.broadcast %2 : vector<4x1xf32> to vector<4x256xf32>
    %4 = arith.mulf %1, %3 : vector<4x256xf32>
    %cst = arith.constant dense<0.000000e+00> : vector<256xf32>
    %5 = vector.multi_reduction <add>, %4, %cst [0] : vector<4x256xf32> to vector<256xf32>
    %6 = vector.shape_cast %5 : vector<256xf32> to vector<1x256xf32>
    %7 = arith.negf %6 : vector<1x256xf32>
    %8 = math.exp %7 : vector<1x256xf32>
    %cst_4 = arith.constant 1.000000e+00 : f32
    %9 = vector.broadcast %cst_4 : f32 to vector<1x256xf32>
    %10 = arith.addf %9, %8 : vector<1x256xf32>
    %11 = arith.divf %9, %10 : vector<1x256xf32>
    %cst_5 = arith.constant dense<0.000000e+00> : vector<4xf32>
    %12 = vector.multi_reduction <add>, %1, %cst_5 [1] : vector<4x256xf32> to vector<4xf32>
    %13 = vector.shape_cast %12 : vector<4xf32> to vector<4x1xf32>
    %cst_6 = arith.constant 3.906250e-03 : f32
    %14 = vector.broadcast %cst_6 : f32 to vector<4x1xf32>
    %15 = arith.mulf %13, %14 : vector<4x1xf32>
    %c0_7 = arith.constant 0 : index
    %c0_8 = arith.constant 0 : index
    %16 = vector.load %arg3[%c0_7, %c0_8] : memref<4x1xf32, #tpu.memory_space<vmem>>, vector<4x1xf32>
    %17 = arith.mulf %15, %16 : vector<4x1xf32>
    %18 = vector.shape_cast %17 : vector<4x1xf32> to vector<1x4x1xf32>
    %cst_9 = arith.constant dense<0.000000e+00> : vector<1xf32>
    %19 = vector.multi_reduction <add>, %18, %cst_9 [1, 2] : vector<1x4x1xf32> to vector<1xf32>
    %20 = vector.shape_cast %19 : vector<1xf32> to vector<1x1x1xf32>
    %21 = vector.extract %20[0, 0, 0] : f32 from vector<1x1x1xf32>
    %cst_10 = arith.constant 0.000000e+00 : f32
    %22 = arith.maximumf %21, %cst_10 : f32
    %23 = vector.broadcast %11 : vector<1x256xf32> to vector<4x256xf32>
    %24 = arith.mulf %1, %23 : vector<4x256xf32>
    %25 = vector.broadcast %22 : f32 to vector<4x256xf32>
    %26 = arith.mulf %1, %25 : vector<4x256xf32>
    %27 = arith.maximumf %26, %24 : vector<4x256xf32>
    %c0_11 = arith.constant 0 : index
    %c0_12 = arith.constant 0 : index
    %c0_13 = arith.constant 0 : index
    %28 = vector.load %arg4[%c0_11, %c0_12, %c0_13] : memref<1x4x256xf32, #tpu.memory_space<vmem>>, vector<1x4x256xf32>
    %29 = vector.shape_cast %28 : vector<1x4x256xf32> to vector<4x256xf32>
    %30 = vector.shape_cast %27 : vector<4x256xf32> to vector<1x4x256xf32>
    tpu.vector_store %arg4[%c0_11, %c0_12, %c0_13], %30 {strides = array<i32>} : memref<1x4x256xf32, #tpu.memory_space<vmem>>, vector<1x4x256xf32>,
    return
  }
  func.func @transform_0(%arg0: i32) -> (i32, i32, i32) {
    %c0_i32 = arith.constant 0 : i32
    %c0_i32_0 = arith.constant 0 : i32
    %c0_i32_1 = arith.constant 0 : i32
    return %arg0, %c0_i32, %c0_i32_0 : i32, i32, i32
  }
  func.func @transform_1(%arg0: i32) -> (i32, i32) {
    %c0_i32 = arith.constant 0 : i32
    %c0_i32_0 = arith.constant 0 : i32
    %c0_i32_1 = arith.constant 0 : i32
    return %c0_i32, %c0_i32_0 : i32, i32
  }
  func.func @transform_2(%arg0: i32) -> (i32, i32) {
    %c0_i32 = arith.constant 0 : i32
    %c0_i32_0 = arith.constant 0 : i32
    %c0_i32_1 = arith.constant 0 : i32
    return %c0_i32, %c0_i32_0 : i32, i32
  }
  func.func @transform_3(%arg0: i32) -> (i32, i32, i32) {
    %c0_i32 = arith.constant 0 : i32
    %c0_i32_0 = arith.constant 0 : i32
    %c0_i32_1 = arith.constant 0 : i32
    return %arg0, %c0_i32, %c0_i32_0 : i32, i32, i32
  }
}

</mosaic_0001>

<llo_original>
// kernel: tpu_custom_call.1
$region0: #{tpu_custom_call.1}
  #allocation0 [shape = 'u32[]', space=smem, size = 0x4, offset = 0x4, fixed_abs, tag = 'smem constant byte address 0x4 - core index']
  #allocation1 [shape = 'u32[144,128]{1,0:T(1,128)}', space=vmem, size = 0x12000, scoped, tag = 'internal scratch']
  %s0 = inlined_call_operand.hbm [shape: f32[2,4,256], index: 0, kind: input, shape index: {}]
  %s1 = inlined_call_operand.vmem [shape: f32[4,1], index: 1, kind: input, shape index: {}]
  %s2 = inlined_call_operand.vmem [shape: f32[4,1], index: 2, kind: input, shape index: {}]
  %s3 = inlined_call_operand.hbm [shape: f32[2,4,256], index: 3, kind: output, shape index: {}]
  %s4 = sld [smem:[#allocation0]]
  $region49: #{tpu_custom_call.1} parent=0
    _
  %s6 = ssub.s32 1, %s4
  %s7 = scalar_select 0, %s6, %s4
  $region1: #{tpu_custom_call.1} parent=0
    #allocation2 [shape = 'u8[8192]{0}', space=vmem, size = 0x2000, scoped, tag = 'input window, operand 0']
    #allocation3 [shape = 's32[2]{0}', space=sflag, size = 0x8, scoped, tag = 'scoped memory for tpu_custom_call.1']
    #allocation4 [shape = 's32[2]{0}', space=sflag, size = 0x8, scoped, tag = 'scoped memory for tpu_custom_call.1']
    #allocation5 [shape = 'u8[8192]{0}', space=vmem, size = 0x2000, scoped, tag = 'output window, operand 0']
    %8 = vsyncpa [#allocation3], 0
    %s9 = scalar_lea.sflag [#allocation3], 1
    %10 = vsyncpa %s9, 0
    %11 = vsyncpa [#allocation4], 0
    %s12 = scalar_lea.sflag [#allocation4], 1
    %13 = vsyncpa %s12, 0
    loop: start=0, step=1, limit=4
    $region2: #{tpu_custom_call.1} parent=1 // loop_pre_header
      _
    $region3: #{tpu_custom_call.1} parent=1 // loop_header
      %s15 = sphi 0, %s19
      %p16 = scmp.ge.s32.totalorder %s15, 4
      %s25 = sphi 0, %s27
      %s28 = sphi 0, %s25
      %s29 = sphi 0, %s28
      %s45 = sphi 0, %s29
      %s49 = sphi 0, %s49
      %s51 = sphi 0, %s49
      %s52 = sphi 0, %s51
      %s66 = sphi 0, %s52
      %s70 = sphi 0, %s70
      %s72 = sphi 0, %s70
      %s73 = sphi 0, %s72
      %s87 = sphi 0, %s73
      %s93 = sphi 0, %s95
      %s96 = sphi 0, %s93
      %s97 = sphi 0, %s96
      %s113 = sphi 0, %s97
    $region4: #{tpu_custom_call.1} parent=1 // loop_header_branch
      %18 = sbr.rel (%p16) target = $region8
    $region5: #{tpu_custom_call.1} parent=1 // loop_body
      %s20 = ssub.s32 %s15, 1
      %s21 = ssub.s32 %s15, 2
      %s22 = sadd.s32 %s15, 1
      %s23 = ssub.s32 %s15, %s22
      %p24 = scmp.eq.s32.totalorder %s23, 0
      %s26 = sadd.s32 %s25, 1
      %s27 = scalar_select %p24, %s25, %s26
      %p30 = pneg %p24
      %p31 = scmp.eq.s32.totalorder %s15, 1
      %p32 = por %p30, %p31
      %p33 = scmp.ne.s32.totalorder %s25, %s28
      %p34 = scmp.eq.s32.totalorder %s15, 0
      %p35 = por %p33, %p34
      %p36 = scmp.ne.s32.totalorder %s25, %s28
      %p37 = scmp.eq.s32.totalorder %s20, 1
      %p38 = por %p36, %p37
      %p39 = scmp.ne.s32.totalorder %s28, %s29
      %p40 = scmp.eq.s32.totalorder %s20, 0
      %p41 = por %p39, %p40
      %p42 = scmp.ne.s32.totalorder %s28, %s29
      %p43 = scmp.eq.s32.totalorder %s21, 1
      %p44 = por %p42, %p43
      %p46 = scmp.ne.s32.totalorder %s29, %s45
      %p47 = scmp.eq.s32.totalorder %s21, 0
      %p48 = por %p46, %p47
      %s50 = sadd.s32 %s49, 1
      %p53 = scmp.eq.s32.totalorder %s15, 1
      %p54 = scmp.ne.s32.totalorder %s49, %s51
      %p55 = scmp.eq.s32.totalorder %s15, 0
      %p56 = por %p54, %p55
      %p57 = scmp.ne.s32.totalorder %s49, %s51
      %p58 = scmp.eq.s32.totalorder %s20, 1
      %p59 = por %p57, %p58
      %p60 = scmp.ne.s32.totalorder %s51, %s52
      %p61 = scmp.eq.s32.totalorder %s20, 0
      %p62 = por %p60, %p61
      %p63 = scmp.ne.s32.totalorder %s51, %s52
      %p64 = scmp.eq.s32.totalorder %s21, 1
      %p65 = por %p63, %p64
      %p67 = scmp.ne.s32.totalorder %s52, %s66
      %p68 = scmp.eq.s32.totalorder %s21, 0
      %p69 = por %p67, %p68
      %s71 = sadd.s32 %s70, 1
      %p74 = scmp.eq.s32.totalorder %s15, 1
      %p75 = scmp.ne.s32.totalorder %s70, %s72
      %p76 = scmp.eq.s32.totalorder %s15, 0
      %p77 = por %p75, %p76
      %p78 = scmp.ne.s32.totalorder %s70, %s72
      %p79 = scmp.eq.s32.totalorder %s20, 1
      %p80 = por %p78, %p79
      %p81 = scmp.ne.s32.totalorder %s72, %s73
      %p82 = scmp.eq.s32.totalorder %s20, 0
      %p83 = por %p81, %p82
      %p84 = scmp.ne.s32.totalorder %s72, %s73
      %p85 = scmp.eq.s32.totalorder %s21, 1
      %p86 = por %p84, %p85
      %p88 = scmp.ne.s32.totalorder %s73, %s87
      %p89 = scmp.eq.s32.totalorder %s21, 0
      %p90 = por %p88, %p89
      %s91 = ssub.s32 %s15, %s22
      %p92 = scmp.eq.s32.totalorder %s91, 0
      %s94 = sadd.s32 %s93, 1
      %s95 = scalar_select %p92, %s93, %s94
      %p98 = pneg %p92
      %p99 = scmp.eq.s32.totalorder %s15, 1
      %p100 = por %p98, %p99
      %p101 = scmp.ne.s32.totalorder %s93, %s96
      %p102 = scmp.eq.s32.totalorder %s15, 0
      %p103 = por %p101, %p102
      %p104 = scmp.ne.s32.totalorder %s93, %s96
      %p105 = scmp.eq.s32.totalorder %s20, 1
      %p106 = por %p104, %p105
      %p107 = scmp.ne.s32.totalorder %s96, %s97
      %p108 = scmp.eq.s32.totalorder %s20, 0
      %p109 = por %p107, %p108
      %p110 = scmp.ne.s32.totalorder %s96, %s97
      %p111 = scmp.eq.s32.totalorder %s21, 1
      %p112 = por %p110, %p111
      %p114 = scmp.ne.s32.totalorder %s97, %s113
      %p115 = scmp.eq.s32.totalorder %s21, 0
      %p116 = por %p114, %p115
      %p117 = scmp.le.s32.totalorder 1, %s15
      %p118 = scmp.lt.s32.totalorder %s15, 3
      %p119 = pnand %p117, %p118
      %p120 = pneg %p119
      // Predicated region
      $region9: #{tpu_custom_call.1} parent=5 // pred_check
        _
      $region10: #{tpu_custom_call.1} parent=5 // pred_check_branch
        %122 = sbr.rel (%p119) target = $region12
      $region11: #{tpu_custom_call.1} parent=5 // pred_region
        %s123 = ssub.s32 %s15, 1
        // Predicated region
        $region13: #{tpu_custom_call.1} parent=11 // pred_check
          %p124 = pneg %p62
        $region14: #{tpu_custom_call.1} parent=11 // pred_check_branch
          %126 = sbr.rel (%p124) target = $region16
        $region15: #{tpu_custom_call.1} parent=11 // pred_region
          _
        $region16: #{tpu_custom_call.1} parent=11 // pred_fallthru
          _
        // Predicated region
        $region17: #{tpu_custom_call.1} parent=11 // pred_check
          %p127 = pneg %p83
        $region18: #{tpu_custom_call.1} parent=11 // pred_check_branch
          %129 = sbr.rel (%p127) target = $region20
        $region19: #{tpu_custom_call.1} parent=11 // pred_region
          _
        $region20: #{tpu_custom_call.1} parent=11 // pred_fallthru
          _
      $region12: #{tpu_custom_call.1} parent=5 // pred_fallthru
        _
      %p130 = scmp.lt.s32.totalorder %s15, 2
      // Predicated region
      $region21: #{tpu_custom_call.1} parent=5 // pred_check
        %p131 = pneg %p130
      $region22: #{tpu_custom_call.1} parent=5 // pred_check_branch
        %133 = sbr.rel (%p131) target = $region24
      $region23: #{tpu_custom_call.1} parent=5 // pred_region
        // Predicated region
        $region25: #{tpu_custom_call.1} parent=23 // pred_check
          %p134 = pneg %p35
        $region26: #{tpu_custom_call.1} parent=23 // pred_check_branch
          %136 = sbr.rel (%p134) target = $region28
        $region27: #{tpu_custom_call.1} parent=23 // pred_region
          %s137 = sand.u32 %s25, 1
          %s138 = scalar_lea.sflag [#allocation3], %s137
          %s139 = sand.u32 %s25, 1
          %s140 = smul.addr %s139, 8
          %s141 = scalar_lea.vmem [#allocation2], %s140
          %s143 = ssub.s32 128, 128
          %144 = vsyncadd %s138, %s143
          %s145 = smul.addr %s15, 2
          %s146 = smul.addr %s145, 64
          %s147 = scalar_lea.hbm %s0, %s146
          %s149 = sshll.u32 %s141, 4
          %s150 = int_to_ptr.vmem [resolvable:$true] %s149
          %152 = dma.hbm_to_vmem [thread:$0]  %s147, 128, %s150, %s138
        $region28: #{tpu_custom_call.1} parent=23 // pred_fallthru
          _
      $region24: #{tpu_custom_call.1} parent=5 // pred_fallthru
        _
      %p153 = scmp.le.s32.totalorder 1, %s15
      %p154 = scmp.lt.s32.totalorder %s15, 3
      %p155 = pnand %p153, %p154
      %p156 = pneg %p155
      // Predicated region
      $region29: #{tpu_custom_call.1} parent=5 // pred_check
        _
      $region30: #{tpu_custom_call.1} parent=5 // pred_check_branch
        %158 = sbr.rel (%p155) target = $region32
      $region31: #{tpu_custom_call.1} parent=5 // pred_region
        %s159 = ssub.s32 %s15, 1
        %s160 = sand.u32 %s28, 1
        %s161 = scalar_lea.sflag [#allocation3], %s160
        %s162 = sand.u32 %s28, 1
        %s163 = smul.addr %s162, 8
        %s164 = scalar_lea.vmem [#allocation2], %s163
        // Predicated region
        $region33: #{tpu_custom_call.1} parent=31 // pred_check
          %p165 = pneg %p41
        $region34: #{tpu_custom_call.1} parent=31 // pred_check_branch
          %167 = sbr.rel (%p165) target = $region36
        $region35: #{tpu_custom_call.1} parent=31 // pred_region
          %168 = dma.done %s161, 128
        $region36: #{tpu_custom_call.1} parent=31 // pred_fallthru
          _
        %s169 = sand.u32 %s28, 1
        %s170 = scalar_lea.sflag [#allocation3], %s169
        %s171 = sand.u32 %s28, 1
        %s172 = smul.addr %s171, 8
        %s173 = scalar_lea.vmem [#allocation2], %s172
        %p174 = pneg %p41
        %p175 = pneg %p38
        %p176 = pneg %p62
        %p177 = pneg %p59
        %p178 = pneg %p83
        %p179 = pneg %p80
        %p180 = pneg %p109
        %p181 = pneg %p106
        %s182 = sand.u32 %s96, 1
        %s183 = scalar_lea.sflag [#allocation4], %s182
        %s184 = sand.u32 %s96, 1
        %s185 = smul.addr %s184, 8
        %s186 = scalar_lea.vmem [#allocation5], %s185
        %v187 = vld [vmem:[%s164] sm:$0xff]
        %v188 = vld [vmem:[%s1] sm:$0xf]
        %190 = vset.pattern.permute.xlu0 0
        %191 = vperm.xlu0 %190, %v188
        %v192 = vpop.permute.xlu0 %191
        %v194 = vunpack.c.l.s4 839922192
        %v195 = vunpack.c.0.s8 %v194
        %v196 = vlaneseq
        %v197 = vshrl.u32 %v196, 7
        %v198 = vsub.s32 %v195, %v197
        %v199 = vrot.slane %v192, %v198
        %v201 = vmul.f32 %v187, %v199
        %v203 = vcombine.high %v201, %v201
        %vm205 = vcmask 1043456
        %v206 = vsel %vm205, %v201, 0.0
        %v207 = vrot.slane %v206, 4
        %v208 = vadd.f32 %v206, %v207
        %v209 = vrot.slane %v208, 2
        %v210 = vadd.f32 %v208, %v209
        %v211 = vrot.slane %v210, 1
        %v212 = vadd.f32 %v210, %v211
        %v213 = vsel %vm205, %v203, 0.0
        %v214 = vrot.slane %v213, 4
        %v215 = vadd.f32 %v213, %v214
        %v216 = vrot.slane %v215, 2
        %v217 = vadd.f32 %v215, %v216
        %v218 = vrot.slane %v217, 1
        %v219 = vadd.f32 %v217, %v218
        %v220 = vxor.u32 %v212, 2147483648
        %v221 = vxor.u32 %v219, 2147483648
        %v222 = vmul.f32 %v220, 1.442695
        %v223 = vpow.pop %v222
        %v224 = vmul.f32 %v221, 1.442695
        %v225 = vpow.pop %v224
        %v226 = vadd.f32 %v223, 1.0
        %v227 = vadd.f32 %v225, 1.0
        %v228 = vrcp.pop %v226
        %v229 = vmul.f32 1.0, %v228
        %v230 = vrcp.pop %v227
        %v231 = vmul.f32 1.0, %v230
        %v233 = vcombine.high %v187, %v187
        %v235 = vsel %vm205, %v187, 0.0
        %v236 = vsel %vm205, %v233, 0.0
        %v237 = vadd.f32 %v235, %v236
        %238 = vadd.xlane.f32.xlu0 %v237
        %v239 = vpop.xlane.xlu0 %238
        %v240 = vmul.f32 %v239, 0.00390625
        %v241 = vld [vmem:[%s2] sm:$0xf]
        %v242 = vmul.f32 %v240, %v241
        %vm243 = vcmask 3072
        %v244 = vsel %vm243, %v242, 0.0
        %245 = vadd.xlane.f32.xlu0 %v244
        %v246 = vpop.xlane.xlu0 %245
        %v247 = vrot.slane %v246, 4
        %v248 = vadd.f32 %v246, %v247
        %v249 = vrot.slane %v248, 2
        %v250 = vadd.f32 %v248, %v249
        %v251 = vrot.slane %v250, 1
        %v252 = vadd.f32 %v250, %v251
        %s253 = vtos %v252
        %s254 = smax.f32 %s253, 0.0
        %v257 = vcombine.low %v229, %v231
        %v259 = vmul.f32 %v187, %v257
        %v260 = vstv %s254
        %v261 = vmul.f32 %v187, %v260
        %v262 = vmax.f32 %v261, %v259
        %263 = vst [vmem:[%s186] sm:$0xff] %v262
        %s264 = sand.u32 %s96, 1
        %s265 = scalar_lea.sflag [#allocation4], %s264
        %s266 = sand.u32 %s96, 1
        %s267 = smul.addr %s266, 8
        %s268 = scalar_lea.vmem [#allocation5], %s267
        // Predicated region
        $region37: #{tpu_custom_call.1} parent=31 // pred_check
          %p269 = pneg %p106
        $region38: #{tpu_custom_call.1} parent=31 // pred_check_branch
          %271 = sbr.rel (%p269) target = $region40
        $region39: #{tpu_custom_call.1} parent=31 // pred_region
          %s273 = ssub.s32 128, 128
          %274 = vsyncadd %s265, %s273
          %s275 = smul.addr %s20, 2
          %s276 = smul.addr %s275, 64
          %s277 = scalar_lea.hbm %s3, %s276
          %s279 = sshll.u32 %s268, 4
          %s280 = int_to_ptr.vmem [resolvable:$true] %s279
          %282 = dma.vmem_to_hbm [thread:$0]  %s280, 128, %s277, %s265
        $region40: #{tpu_custom_call.1} parent=31 // pred_fallthru
          _
      $region32: #{tpu_custom_call.1} parent=5 // pred_fallthru
        _
      %p283 = scmp.le.s32.totalorder 2, %s15
      // Predicated region
      $region41: #{tpu_custom_call.1} parent=5 // pred_check
        %p284 = pneg %p283
      $region42: #{tpu_custom_call.1} parent=5 // pred_check_branch
        %286 = sbr.rel (%p284) target = $region44
      $region43: #{tpu_custom_call.1} parent=5 // pred_region
        %s287 = ssub.s32 %s15, 2
        // Predicated region
        $region45: #{tpu_custom_call.1} parent=43 // pred_check
          %p288 = pneg %p112
        $region46: #{tpu_custom_call.1} parent=43 // pred_check_branch
          %290 = sbr.rel (%p288) target = $region48
        $region47: #{tpu_custom_call.1} parent=43 // pred_region
          %s291 = sand.u32 %s97, 1
          %s292 = scalar_lea.sflag [#allocation4], %s291
          %s293 = sand.u32 %s97, 1
          %s294 = smul.addr %s293, 8
          %s295 = scalar_lea.vmem [#allocation5], %s294
          %296 = dma.done %s292, 128
        $region48: #{tpu_custom_call.1} parent=43 // pred_fallthru
          _
      $region44: #{tpu_custom_call.1} parent=5 // pred_fallthru
        _
    $region6: #{tpu_custom_call.1} parent=1 // loop_footer
      %s19 = sadd.s32 1, %s15
    $region7: #{tpu_custom_call.1} parent=1 // loop_footer_branch
      %14 = sbr.rel target = $region3
    $region8: #{tpu_custom_call.1} parent=1 // loop_exit
      _
    %297 = vsyncpa [#allocation3], 1
    %s298 = scalar_lea.sflag [#allocation3], 1
    %299 = vsyncpa %s298, 1
    %300 = vsyncpa [#allocation4], 1
    %s301 = scalar_lea.sflag [#allocation4], 1
    %302 = vsyncpa %s301, 1

</llo_original>
